<compile_context>
chip_gen: v5e
topology: v5e:2x2
jax: 0.10.0
libtpu: 0.0.40
codegen_flags: <defaults>
</compile_context>

<pallas_src>
import jax
import jax.numpy as jnp
from jax import lax
from jax.experimental import pallas as pl
from jax.experimental.pallas import tpu as pltpu


def _make_bottleneck_kernel(H, W):
    HW = H * W

    def kernel(x_ref, mask_ref, w1_ref, b1_ref, w2_ref, b2_ref,
               w3_ref, b3_ref, wd_ref, bd_ref, o_ref):
        x = x_ref[0]                                              # (Cin, HW)

        # ---- conv1 (1x1) + folded affine + relu -> (Cmid, HW)
        out1 = jnp.maximum(
            jnp.dot(w1_ref[...], x, preferred_element_type=jnp.float32)
            + b1_ref[...], 0.0)

        # ---- im2col for the 3x3 SAME conv: 9 lane-rolled, edge-masked copies of out1
        #      stacked along sublanes -> (9*Cmid, HW). Rolls go to the XLU; masks are a
        #      single VPU multiply each (precomputed in the wrapper, no in-kernel iota).
        taps = []
        r = 0
        for kh in range(3):
            for kw in range(3):
                dh, dw = kh - 1, kw - 1
                off = dh * W + dw
                if off == 0:                                      # center tap: no shift/mask
                    taps.append(out1)
                    continue
                shifted = pltpu.roll(out1, (-off) % HW, axis=1)   # shifted[p] = out1[p+off]
                taps.append(shifted * mask_ref[r:r + 1, :])       # zero the wrapped halo
                r += 1
        patches = jnp.concatenate(taps, axis=0)                   # (9*Cmid, HW)

        # ---- conv2 (3x3) as ONE MXU matmul + folded affine + relu -> (Cmid, HW)
        out2 = jnp.maximum(
            jnp.dot(w2_ref[...], patches, preferred_element_type=jnp.float32)
            + b2_ref[...], 0.0)

        # ---- conv3 (1x1) + folded affine -> (Cout, HW)
        out3 = (jnp.dot(w3_ref[...], out2, preferred_element_type=jnp.float32)
                + b3_ref[...])

        # ---- downsample branch: 1x1 conv + folded affine on the ORIGINAL input
        res = (jnp.dot(wd_ref[...], x, preferred_element_type=jnp.float32)
               + bd_ref[...])

        # ---- residual add + relu; (Cout, HW) is lane-dense and already NCHW order
        o_ref[0] = jnp.maximum(out3 + res, 0.0).astype(o_ref.dtype)

    return kernel


def bottleneck_forward(x_nchw, params):
    N, Cin, H, W = x_nchw.shape
    HW = H * W
    w1, w2, w3, wd = params["w1"], params["w2"], params["w3"], params["wd"]
    s1, b1 = params["s1"], params["b1"]
    s2, b2 = params["s2"], params["b2"]
    s3, b3 = params["s3"], params["b3"]
    sd, bd = params["sd"], params["bd"]
    Cmid = w1.shape[0]        # innerplanes
    Cout = w3.shape[0]        # outplanes

    # Fold the per-channel affine scales into the conv weights (done once, wrapper-side).
    w1f = s1[:, None] * w1.reshape(Cmid, Cin)                                  # (Cmid, Cin)
    # OIHW -> (co, kh, kw, ci) -> (co, 9*Cmid); tap order t = kh*3 + kw matches the kernel.
    w2f = s2[:, None] * jnp.transpose(w2, (0, 2, 3, 1)).reshape(Cmid, 9 * Cmid)
    w3f = s3[:, None] * w3.reshape(Cout, Cmid)                                 # (Cout, Cmid)
    wdf = sd[:, None] * wd.reshape(Cout, Cin)                                  # (Cout, Cin)
    b1c, b2c = b1[:, None], b2[:, None]                                        # (C, 1)
    b3c, bdc = b3[:, None], bd[:, None]

    # Edge-validity masks for the 8 non-center 3x3 taps, flattened to the lane axis.
    hh = jnp.arange(H)[:, None]
    ww = jnp.arange(W)[None, :]
    mask_rows = []
    for kh in range(3):
        for kw in range(3):
            dh, dw = kh - 1, kw - 1
            if dh == 0 and dw == 0:
                continue
            m = ((hh + dh >= 0) & (hh + dh < H) & (ww + dw >= 0) & (ww + dw < W))
            mask_rows.append(m.reshape(HW))
    masks = jnp.stack(mask_rows, axis=0).astype(jnp.float32)                   # (8, HW)

    x2d = x_nchw.reshape(N, Cin, HW)           # free reshape, stays NCHW-ordered in HBM

    kernel = _make_bottleneck_kernel(H, W)

    grid_spec = pltpu.PrefetchScalarGridSpec(
        num_scalar_prefetch=0,
        grid=(N,),
        in_specs=[
            pl.BlockSpec((1, Cin, HW), lambda n: (n, 0, 0)),       # x
            pl.BlockSpec((8, HW), lambda n: (0, 0)),               # edge masks
            pl.BlockSpec((Cmid, Cin), lambda n: (0, 0)),           # w1 (scale folded)
            pl.BlockSpec((Cmid, 1), lambda n: (0, 0)),             # b1
            pl.BlockSpec((Cmid, 9 * Cmid), lambda n: (0, 0)),      # w2 (im2col layout)
            pl.BlockSpec((Cmid, 1), lambda n: (0, 0)),             # b2
            pl.BlockSpec((Cout, Cmid), lambda n: (0, 0)),          # w3
            pl.BlockSpec((Cout, 1), lambda n: (0, 0)),             # b3
            pl.BlockSpec((Cout, Cin), lambda n: (0, 0)),           # w_downsample
            pl.BlockSpec((Cout, 1), lambda n: (0, 0)),             # b_downsample
        ],
        out_specs=pl.BlockSpec((1, Cout, HW), lambda n: (n, 0, 0)),
    )

    out = pl.pallas_call(
        kernel,
        out_shape=jax.ShapeDtypeStruct((N, Cout, HW), jnp.float32),
        grid_spec=grid_spec,
        compiler_params=pltpu.CompilerParams(
            dimension_semantics=("parallel",)),     # batch axis -> both TCs on v7x
    )(x2d, masks, w1f, b1c, w2f, b2c, w3f, b3c, wdf, bdc)

    return out.reshape(N, Cout, H, W)              # free reshape: (N,Cout,HW) is NCHW


def init_params(key, inplanes, outplanes, innerplanes):
    """Deterministic synthetic parameters; AffineChannel2d = per-channel (scale, bias)."""
    ks = jax.random.split(key, 12)

    def aff(kg, kb, c):
        s = 1.0 + 0.1 * jax.random.normal(kg, (c,), jnp.float32)
        b = 0.1 * jax.random.normal(kb, (c,), jnp.float32)
        return s, b

    w1 = 0.1 * jax.random.normal(ks[0], (innerplanes, inplanes, 1, 1), jnp.float32)
    w2 = 0.1 * jax.random.normal(ks[1], (innerplanes, innerplanes, 3, 3), jnp.float32)
    w3 = 0.1 * jax.random.normal(ks[2], (outplanes, innerplanes, 1, 1), jnp.float32)
    wd = 0.1 * jax.random.normal(ks[3], (outplanes, inplanes, 1, 1), jnp.float32)
    s1, b1 = aff(ks[4], ks[5], innerplanes)
    s2, b2 = aff(ks[6], ks[7], innerplanes)
    s3, b3 = aff(ks[8], ks[9], outplanes)
    sd, bd = aff(ks[10], ks[11], outplanes)
    return dict(w1=w1, s1=s1, b1=b1, w2=w2, s2=s2, b2=b2,
                w3=w3, s3=s3, b3=b3, wd=wd, sd=sd, bd=bd)


def ref_forward(x, params):
    """Pure-JAX reference (lax conv, NCHW/OIHW) for correctness checking."""
    dn = ("NCHW", "OIHW", "NCHW")

    def conv(a, w):
        return lax.conv_general_dilated(a, w, (1, 1), "SAME", dimension_numbers=dn)

    def aff(y, s, b):
        return y * s[None, :, None, None] + b[None, :, None, None]

    out = jnp.maximum(aff(conv(x, params["w1"].reshape(*params["w1"].shape)),
                          params["s1"], params["b1"]), 0.0)
    out = jnp.maximum(aff(conv(out, params["w2"]), params["s2"], params["b2"]), 0.0)
    out = aff(conv(out, params["w3"]), params["s3"], params["b3"])
    res = aff(conv(x, params["wd"]), params["sd"], params["bd"])
    return jnp.maximum(out + res, 0.0)


if __name__ == "__main__":
    # inplanes=4, innerplanes=8, outplanes=16 -> downsample branch active; H=W=16, N=2.
    N, inplanes, innerplanes, outplanes, H, W = 2, 4, 8, 16, 16, 16
    key = jax.random.PRNGKey(0)
    kx, kp = jax.random.split(key)
    x = jax.random.normal(kx, (N, inplanes, H, W), jnp.float32)   # PyTorch-style NCHW input
    params = init_params(kp, inplanes, outplanes, innerplanes)

    out = bottleneck_forward(x, params)
    out = jax.block_until_ready(out)

    ref = ref_forward(x, params)
    assert out.shape == (N, outplanes, H, W), out.shape
    max_err = float(jnp.max(jnp.abs(out - ref)))
    assert jnp.allclose(out, ref, atol=2e-3, rtol=2e-3), max_err
    print("KERNEL_OK")
</pallas_src>

<mosaic_0001>
module attributes {stable_mosaic.version = 11 : i64} {
  func.func @kernel(%arg0: i32, %arg1: memref<1x4x256xf32, #tpu.memory_space<vmem>>, %arg2: memref<8x256xf32, #tpu.memory_space<vmem>>, %arg3: memref<8x4xf32, #tpu.memory_space<vmem>>, %arg4: memref<8x1xf32, #tpu.memory_space<vmem>>, %arg5: memref<8x72xf32, #tpu.memory_space<vmem>>, %arg6: memref<8x1xf32, #tpu.memory_space<vmem>>, %arg7: memref<16x8xf32, #tpu.memory_space<vmem>>, %arg8: memref<16x1xf32, #tpu.memory_space<vmem>>, %arg9: memref<16x4xf32, #tpu.memory_space<vmem>>, %arg10: memref<16x1xf32, #tpu.memory_space<vmem>>, %arg11: memref<1x16x256xf32, #tpu.memory_space<vmem>>) attributes {dimension_semantics = [#tpu.dimension_semantics<parallel>], iteration_bounds = array<i64: 2>, scalar_prefetch = 0 : i64, scratch_operands = 0 : i64, tpu.core_type = #tpu.core_type<tc>, window_params = [{transform_indices = @transform_0, window_bounds = array<i64: 1, 4, 256>}, {pipeline_mode = #tpu.pipeline_mode<synchronous>, transform_indices = @transform_1, window_bounds = array<i64: 8, 256>}, {pipeline_mode = #tpu.pipeline_mode<synchronous>, transform_indices = @transform_2, window_bounds = array<i64: 8, 4>}, {pipeline_mode = #tpu.pipeline_mode<synchronous>, transform_indices = @transform_3, window_bounds = array<i64: 8, 1>}, {pipeline_mode = #tpu.pipeline_mode<synchronous>, transform_indices = @transform_4, window_bounds = array<i64: 8, 72>}, {pipeline_mode = #tpu.pipeline_mode<synchronous>, transform_indices = @transform_5, window_bounds = array<i64: 8, 1>}, {pipeline_mode = #tpu.pipeline_mode<synchronous>, transform_indices = @transform_6, window_bounds = array<i64: 16, 8>}, {pipeline_mode = #tpu.pipeline_mode<synchronous>, transform_indices = @transform_7, window_bounds = array<i64: 16, 1>}, {pipeline_mode = #tpu.pipeline_mode<synchronous>, transform_indices = @transform_8, window_bounds = array<i64: 16, 4>}, {pipeline_mode = #tpu.pipeline_mode<synchronous>, transform_indices = @transform_9, window_bounds = array<i64: 16, 1>}, {transform_indices = @transform_10, window_bounds = array<i64: 1, 16, 256>}]} {
    %c0 = arith.constant 0 : index
    %c0_0 = arith.constant 0 : index
    %c0_1 = arith.constant 0 : index
    %0 = vector.load %arg1[%c0, %c0_0, %c0_1] : memref<1x4x256xf32, #tpu.memory_space<vmem>>, vector<1x4x256xf32>
    %1 = vector.shape_cast %0 : vector<1x4x256xf32> to vector<4x256xf32>
    %c0_2 = arith.constant 0 : index
    %c0_3 = arith.constant 0 : index
    %2 = vector.load %arg3[%c0_2, %c0_3] : memref<8x4xf32, #tpu.memory_space<vmem>>, vector<8x4xf32>
    %cst = arith.constant dense<0.000000e+00> : vector<8x256xf32>
    %3 = tpu.matmul %2, %1, %cst {dimension_numbers = #tpu.dot_dimension_numbers<[1], [0], [0], [1], [0, 0, 1, 1], [], []>} : vector<8x4xf32>, vector<4x256xf32>, vector<8x256xf32> -> vector<8x256xf32>
    %c0_4 = arith.constant 0 : index
    %c0_5 = arith.constant 0 : index
    %4 = vector.load %arg4[%c0_4, %c0_5] : memref<8x1xf32, #tpu.memory_space<vmem>>, vector<8x1xf32>
    %5 = vector.broadcast %4 : vector<8x1xf32> to vector<8x256xf32>
    %6 = arith.addf %3, %5 : vector<8x256xf32>
    %cst_6 = arith.constant 0.000000e+00 : f32
    %7 = vector.broadcast %cst_6 : f32 to vector<8x256xf32>
    %8 = arith.maximumf %6, %7 : vector<8x256xf32>
    %c17_i32 = arith.constant 17 : i32
    %9 = tpu.dynamic_rotate %8 by %c17_i32 dim 1 : vector<8x256xf32>, i32 -> vector<8x256xf32>
    %c0_7 = arith.constant 0 : index
    %c0_8 = arith.constant 0 : index
    %10 = vector.load %arg2[%c0_7, %c0_8] : memref<8x256xf32, #tpu.memory_space<vmem>>, vector<1x256xf32>
    %11 = vector.broadcast %10 : vector<1x256xf32> to vector<8x256xf32>
    %12 = arith.mulf %9, %11 : vector<8x256xf32>
    %c16_i32 = arith.constant 16 : i32
    %13 = tpu.dynamic_rotate %8 by %c16_i32 dim 1 : vector<8x256xf32>, i32 -> vector<8x256xf32>
    %c1 = arith.constant 1 : index
    %c0_9 = arith.constant 0 : index
    %14 = vector.load %arg2[%c1, %c0_9] : memref<8x256xf32, #tpu.memory_space<vmem>>, vector<1x256xf32>
    %15 = vector.broadcast %14 : vector<1x256xf32> to vector<8x256xf32>
    %16 = arith.mulf %13, %15 : vector<8x256xf32>
    %c15_i32 = arith.constant 15 : i32
    %17 = tpu.dynamic_rotate %8 by %c15_i32 dim 1 : vector<8x256xf32>, i32 -> vector<8x256xf32>
    %c2 = arith.constant 2 : index
    %c0_10 = arith.constant 0 : index
    %18 = vector.load %arg2[%c2, %c0_10] : memref<8x256xf32, #tpu.memory_space<vmem>>, vector<1x256xf32>
    %19 = vector.broadcast %18 : vector<1x256xf32> to vector<8x256xf32>
    %20 = arith.mulf %17, %19 : vector<8x256xf32>
    %c1_i32 = arith.constant 1 : i32
    %21 = tpu.dynamic_rotate %8 by %c1_i32 dim 1 : vector<8x256xf32>, i32 -> vector<8x256xf32>
    %c3 = arith.constant 3 : index
    %c0_11 = arith.constant 0 : index
    %22 = vector.load %arg2[%c3, %c0_11] : memref<8x256xf32, #tpu.memory_space<vmem>>, vector<1x256xf32>
    %23 = vector.broadcast %22 : vector<1x256xf32> to vector<8x256xf32>
    %24 = arith.mulf %21, %23 : vector<8x256xf32>
    %c255_i32 = arith.constant 255 : i32
    %25 = tpu.dynamic_rotate %8 by %c255_i32 dim 1 : vector<8x256xf32>, i32 -> vector<8x256xf32>
    %c4 = arith.constant 4 : index
    %c0_12 = arith.constant 0 : index
    %26 = vector.load %arg2[%c4, %c0_12] : memref<8x256xf32, #tpu.memory_space<vmem>>, vector<1x256xf32>
    %27 = vector.broadcast %26 : vector<1x256xf32> to vector<8x256xf32>
    %28 = arith.mulf %25, %27 : vector<8x256xf32>
    %c241_i32 = arith.constant 241 : i32
    %29 = tpu.dynamic_rotate %8 by %c241_i32 dim 1 : vector<8x256xf32>, i32 -> vector<8x256xf32>
    %c5 = arith.constant 5 : index
    %c0_13 = arith.constant 0 : index
    %30 = vector.load %arg2[%c5, %c0_13] : memref<8x256xf32, #tpu.memory_space<vmem>>, vector<1x256xf32>
    %31 = vector.broadcast %30 : vector<1x256xf32> to vector<8x256xf32>
    %32 = arith.mulf %29, %31 : vector<8x256xf32>
    %c240_i32 = arith.constant 240 : i32
    %33 = tpu.dynamic_rotate %8 by %c240_i32 dim 1 : vector<8x256xf32>, i32 -> vector<8x256xf32>
    %c6 = arith.constant 6 : index
    %c0_14 = arith.constant 0 : index
    %34 = vector.load %arg2[%c6, %c0_14] : memref<8x256xf32, #tpu.memory_space<vmem>>, vector<1x256xf32>
    %35 = vector.broadcast %34 : vector<1x256xf32> to vector<8x256xf32>
    %36 = arith.mulf %33, %35 : vector<8x256xf32>
    %c239_i32 = arith.constant 239 : i32
    %37 = tpu.dynamic_rotate %8 by %c239_i32 dim 1 : vector<8x256xf32>, i32 -> vector<8x256xf32>
    %c7 = arith.constant 7 : index
    %c0_15 = arith.constant 0 : index
    %38 = vector.load %arg2[%c7, %c0_15] : memref<8x256xf32, #tpu.memory_space<vmem>>, vector<1x256xf32>
    %39 = vector.broadcast %38 : vector<1x256xf32> to vector<8x256xf32>
    %40 = arith.mulf %37, %39 : vector<8x256xf32>
    %41 = tpu.concatenate %12, %16, %20, %24, %8, %28, %32, %36, %40 in 0 : vector<8x256xf32>, vector<8x256xf32>, vector<8x256xf32>, vector<8x256xf32>, vector<8x256xf32>, vector<8x256xf32>, vector<8x256xf32>, vector<8x256xf32>, vector<8x256xf32> -> vector<72x256xf32>
    %c0_16 = arith.constant 0 : index
    %c0_17 = arith.constant 0 : index
    %42 = vector.load %arg5[%c0_16, %c0_17] : memref<8x72xf32, #tpu.memory_space<vmem>>, vector<8x72xf32>
    %cst_18 = arith.constant dense<0.000000e+00> : vector<8x256xf32>
    %43 = tpu.matmul %42, %41, %cst_18 {dimension_numbers = #tpu.dot_dimension_numbers<[1], [0], [0], [1], [0, 0, 1, 1], [], []>} : vector<8x72xf32>, vector<72x256xf32>, vector<8x256xf32> -> vector<8x256xf32>
    %c0_19 = arith.constant 0 : index
    %c0_20 = arith.constant 0 : index
    %44 = vector.load %arg6[%c0_19, %c0_20] : memref<8x1xf32, #tpu.memory_space<vmem>>, vector<8x1xf32>
    %45 = vector.broadcast %44 : vector<8x1xf32> to vector<8x256xf32>
    %46 = arith.addf %43, %45 : vector<8x256xf32>
    %cst_21 = arith.constant 0.000000e+00 : f32
    %47 = vector.broadcast %cst_21 : f32 to vector<8x256xf32>
    %48 = arith.maximumf %46, %47 : vector<8x256xf32>
    %c0_22 = arith.constant 0 : index
    %c0_23 = arith.constant 0 : index
    %49 = vector.load %arg7[%c0_22, %c0_23] : memref<16x8xf32, #tpu.memory_space<vmem>>, vector<16x8xf32>
    %cst_24 = arith.constant dense<0.000000e+00> : vector<16x256xf32>
    %50 = tpu.matmul %49, %48, %cst_24 {dimension_numbers = #tpu.dot_dimension_numbers<[1], [0], [0], [1], [0, 0, 1, 1], [], []>} : vector<16x8xf32>, vector<8x256xf32>, vector<16x256xf32> -> vector<16x256xf32>
    %c0_25 = arith.constant 0 : index
    %c0_26 = arith.constant 0 : index
    %51 = vector.load %arg8[%c0_25, %c0_26] : memref<16x1xf32, #tpu.memory_space<vmem>>, vector<16x1xf32>
    %52 = vector.broadcast %51 : vector<16x1xf32> to vector<16x256xf32>
    %53 = arith.addf %50, %52 : vector<16x256xf32>
    %c0_27 = arith.constant 0 : index
    %c0_28 = arith.constant 0 : index
    %54 = vector.load %arg9[%c0_27, %c0_28] : memref<16x4xf32, #tpu.memory_space<vmem>>, vector<16x4xf32>
    %cst_29 = arith.constant dense<0.000000e+00> : vector<16x256xf32>
    %55 = tpu.matmul %54, %1, %cst_29 {dimension_numbers = #tpu.dot_dimension_numbers<[1], [0], [0], [1], [0, 0, 1, 1], [], []>} : vector<16x4xf32>, vector<4x256xf32>, vector<16x256xf32> -> vector<16x256xf32>
    %c0_30 = arith.constant 0 : index
    %c0_31 = arith.constant 0 : index
    %56 = vector.load %arg10[%c0_30, %c0_31] : memref<16x1xf32, #tpu.memory_space<vmem>>, vector<16x1xf32>
    %57 = vector.broadcast %56 : vector<16x1xf32> to vector<16x256xf32>
    %58 = arith.addf %55, %57 : vector<16x256xf32>
    %59 = arith.addf %53, %58 : vector<16x256xf32>
    %cst_32 = arith.constant 0.000000e+00 : f32
    %60 = vector.broadcast %cst_32 : f32 to vector<16x256xf32>
    %61 = arith.maximumf %59, %60 : vector<16x256xf32>
    %c0_33 = arith.constant 0 : index
    %c0_34 = arith.constant 0 : index
    %c0_35 = arith.constant 0 : index
    %62 = vector.load %arg11[%c0_33, %c0_34, %c0_35] : memref<1x16x256xf32, #tpu.memory_space<vmem>>, vector<1x16x256xf32>
    %63 = vector.shape_cast %62 : vector<1x16x256xf32> to vector<16x256xf32>
    %64 = vector.shape_cast %61 : vector<16x256xf32> to vector<1x16x256xf32>
    tpu.vector_store %arg11[%c0_33, %c0_34, %c0_35], %64 {strides = array<i32>} : memref<1x16x256xf32, #tpu.memory_space<vmem>>, vector<1x16x256xf32>,
    return
  }
  func.func @transform_0(%arg0: i32) -> (i32, i32, i32) {
    %c0_i32 = arith.constant 0 : i32
    %c0_i32_0 = arith.constant 0 : i32
    %c0_i32_1 = arith.constant 0 : i32
    return %arg0, %c0_i32, %c0_i32_0 : i32, i32, i32
  }
  func.func @transform_1(%arg0: i32) -> (i32, i32) {
    %c0_i32 = arith.constant 0 : i32
    %c0_i32_0 = arith.constant 0 : i32
    %c0_i32_1 = arith.constant 0 : i32
    return %c0_i32, %c0_i32_0 : i32, i32
  }
  func.func @transform_2(%arg0: i32) -> (i32, i32) {
    %c0_i32 = arith.constant 0 : i32
    %c0_i32_0 = arith.constant 0 : i32
    %c0_i32_1 = arith.constant 0 : i32
    return %c0_i32, %c0_i32_0 : i32, i32
  }
  func.func @transform_3(%arg0: i32) -> (i32, i32) {
    %c0_i32 = arith.constant 0 : i32
    %c0_i32_0 = arith.constant 0 : i32
    %c0_i32_1 = arith.constant 0 : i32
    return %c0_i32, %c0_i32_0 : i32, i32
  }
  func.func @transform_4(%arg0: i32) -> (i32, i32) {
    %c0_i32 = arith.constant 0 : i32
    %c0_i32_0 = arith.constant 0 : i32
    %c0_i32_1 = arith.constant 0 : i32
    return %c0_i32, %c0_i32_0 : i32, i32
  }
  func.func @transform_5(%arg0: i32) -> (i32, i32) {
    %c0_i32 = arith.constant 0 : i32
    %c0_i32_0 = arith.constant 0 : i32
    %c0_i32_1 = arith.constant 0 : i32
    return %c0_i32, %c0_i32_0 : i32, i32
  }
  func.func @transform_6(%arg0: i32) -> (i32, i32) {
    %c0_i32 = arith.constant 0 : i32
    %c0_i32_0 = arith.constant 0 : i32
    %c0_i32_1 = arith.constant 0 : i32
    return %c0_i32, %c0_i32_0 : i32, i32
  }
  func.func @transform_7(%arg0: i32) -> (i32, i32) {
    %c0_i32 = arith.constant 0 : i32
    %c0_i32_0 = arith.constant 0 : i32
    %c0_i32_1 = arith.constant 0 : i32
    return %c0_i32, %c0_i32_0 : i32, i32
  }
  func.func @transform_8(%arg0: i32) -> (i32, i32) {
    %c0_i32 = arith.constant 0 : i32
    %c0_i32_0 = arith.constant 0 : i32
    %c0_i32_1 = arith.constant 0 : i32
    return %c0_i32, %c0_i32_0 : i32, i32
  }
  func.func @transform_9(%arg0: i32) -> (i32, i32) {
    %c0_i32 = arith.constant 0 : i32
    %c0_i32_0 = arith.constant 0 : i32
    %c0_i32_1 = arith.constant 0 : i32
    return %c0_i32, %c0_i32_0 : i32, i32
  }
  func.func @transform_10(%arg0: i32) -> (i32, i32, i32) {
    %c0_i32 = arith.constant 0 : i32
    %c0_i32_0 = arith.constant 0 : i32
    %c0_i32_1 = arith.constant 0 : i32
    return %arg0, %c0_i32, %c0_i32_0 : i32, i32, i32
  }
}

</mosaic_0001>

<llo_original>
// kernel: tpu_custom_call.1
$region0: #{tpu_custom_call.1}
  #allocation0 [shape = 'u32[]', space=smem, size = 0x4, offset = 0x4, fixed_abs, tag = 'smem constant byte address 0x4 - core index']
  #allocation1 [shape = 'u32[72,128]{1,0:T(1,128)}', space=vmem, size = 0x9000, scoped, tag = 'internal scratch']
  %s0 = inlined_call_operand.vmem [shape: f32[2,4,256], index: 0, kind: input, shape index: {}]
  %s1 = inlined_call_operand.vmem [shape: f32[8,256], index: 1, kind: input, shape index: {}]
  %s2 = inlined_call_operand.vmem [shape: f32[8,4], index: 2, kind: input, shape index: {}]
  %s3 = inlined_call_operand.vmem [shape: f32[8,1], index: 3, kind: input, shape index: {}]
  %s4 = inlined_call_operand.vmem [shape: f32[8,72], index: 4, kind: input, shape index: {}]
  %s5 = inlined_call_operand.vmem [shape: f32[8,1], index: 5, kind: input, shape index: {}]
  %s6 = inlined_call_operand.vmem [shape: f32[16,8], index: 6, kind: input, shape index: {}]
  %s7 = inlined_call_operand.vmem [shape: f32[16,1], index: 7, kind: input, shape index: {}]
  %s8 = inlined_call_operand.vmem [shape: f32[16,4], index: 8, kind: input, shape index: {}]
  %s9 = inlined_call_operand.vmem [shape: f32[16,1], index: 9, kind: input, shape index: {}]
  %s10 = inlined_call_operand.hbm [shape: f32[2,16,256], index: 10, kind: output, shape index: {}]
  %s11 = sld [smem:[#allocation0]]
  $region73: #{tpu_custom_call.1} parent=0
    _
  %s13 = ssub.s32 1, %s11
  %s14 = scalar_select 0, %s13, %s11
  $region1: #{tpu_custom_call.1} parent=0
    #allocation2 [shape = 'u8[32768]{0}', space=vmem, size = 0x8000, scoped, tag = 'output window, operand 0']
    #allocation3 [shape = 's32[2]{0}', space=sflag, size = 0x8, scoped, tag = 'scoped memory for tpu_custom_call.1']
    %15 = vsyncpa [#allocation3], 0
    %s16 = scalar_lea.sflag [#allocation3], 1
    %17 = vsyncpa %s16, 0
    loop: start=0, step=1, limit=4
    $region2: #{tpu_custom_call.1} parent=1 // loop_pre_header
      _
    $region3: #{tpu_custom_call.1} parent=1 // loop_header
      %s19 = sphi 0, %s23
      %p20 = scmp.ge.s32.totalorder %s19, 4
      %s29 = sphi 0, %s31
      %s32 = sphi 0, %s29
      %s33 = sphi 0, %s32
      %s49 = sphi 0, %s33
      %s53 = sphi 0, %s53
      %s55 = sphi 0, %s53
      %s56 = sphi 0, %s55
      %s70 = sphi 0, %s56
      %s74 = sphi 0, %s74
      %s76 = sphi 0, %s74
      %s77 = sphi 0, %s76
      %s91 = sphi 0, %s77
      %s95 = sphi 0, %s95
      %s97 = sphi 0, %s95
      %s98 = sphi 0, %s97
      %s112 = sphi 0, %s98
      %s116 = sphi 0, %s116
      %s118 = sphi 0, %s116
      %s119 = sphi 0, %s118
      %s133 = sphi 0, %s119
      %s137 = sphi 0, %s137
      %s139 = sphi 0, %s137
      %s140 = sphi 0, %s139
      %s154 = sphi 0, %s140
      %s158 = sphi 0, %s158
      %s160 = sphi 0, %s158
      %s161 = sphi 0, %s160
      %s175 = sphi 0, %s161
      %s179 = sphi 0, %s179
      %s181 = sphi 0, %s179
      %s182 = sphi 0, %s181
      %s196 = sphi 0, %s182
      %s200 = sphi 0, %s200
      %s202 = sphi 0, %s200
      %s203 = sphi 0, %s202
      %s217 = sphi 0, %s203
      %s221 = sphi 0, %s221
      %s223 = sphi 0, %s221
      %s224 = sphi 0, %s223
      %s238 = sphi 0, %s224
      %s244 = sphi 0, %s246
      %s247 = sphi 0, %s244
      %s248 = sphi 0, %s247
      %s264 = sphi 0, %s248
    $region4: #{tpu_custom_call.1} parent=1 // loop_header_branch
      %22 = sbr.rel (%p20) target = $region8
    $region5: #{tpu_custom_call.1} parent=1 // loop_body
      %s24 = ssub.s32 %s19, 1
      %s25 = ssub.s32 %s19, 2
      %s26 = sadd.s32 %s19, 1
      %s27 = ssub.s32 %s19, %s26
      %p28 = scmp.eq.s32.totalorder %s27, 0
      %s30 = sadd.s32 %s29, 1
      %s31 = scalar_select %p28, %s29, %s30
      %p34 = pneg %p28
      %p35 = scmp.eq.s32.totalorder %s19, 1
      %p36 = por %p34, %p35
      %p37 = scmp.ne.s32.totalorder %s29, %s32
      %p38 = scmp.eq.s32.totalorder %s19, 0
      %p39 = por %p37, %p38
      %p40 = scmp.ne.s32.totalorder %s29, %s32
      %p41 = scmp.eq.s32.totalorder %s24, 1
      %p42 = por %p40, %p41
      %p43 = scmp.ne.s32.totalorder %s32, %s33
      %p44 = scmp.eq.s32.totalorder %s24, 0
      %p45 = por %p43, %p44
      %p46 = scmp.ne.s32.totalorder %s32, %s33
      %p47 = scmp.eq.s32.totalorder %s25, 1
      %p48 = por %p46, %p47
      %p50 = scmp.ne.s32.totalorder %s33, %s49
      %p51 = scmp.eq.s32.totalorder %s25, 0
      %p52 = por %p50, %p51
      %s54 = sadd.s32 %s53, 1
      %p57 = scmp.eq.s32.totalorder %s19, 1
      %p58 = scmp.ne.s32.totalorder %s53, %s55
      %p59 = scmp.eq.s32.totalorder %s19, 0
      %p60 = por %p58, %p59
      %p61 = scmp.ne.s32.totalorder %s53, %s55
      %p62 = scmp.eq.s32.totalorder %s24, 1
      %p63 = por %p61, %p62
      %p64 = scmp.ne.s32.totalorder %s55, %s56
      %p65 = scmp.eq.s32.totalorder %s24, 0
      %p66 = por %p64, %p65
      %p67 = scmp.ne.s32.totalorder %s55, %s56
      %p68 = scmp.eq.s32.totalorder %s25, 1
      %p69 = por %p67, %p68
      %p71 = scmp.ne.s32.totalorder %s56, %s70
      %p72 = scmp.eq.s32.totalorder %s25, 0
      %p73 = por %p71, %p72
      %s75 = sadd.s32 %s74, 1
      %p78 = scmp.eq.s32.totalorder %s19, 1
      %p79 = scmp.ne.s32.totalorder %s74, %s76
      %p80 = scmp.eq.s32.totalorder %s19, 0
      %p81 = por %p79, %p80
      %p82 = scmp.ne.s32.totalorder %s74, %s76
      %p83 = scmp.eq.s32.totalorder %s24, 1
      %p84 = por %p82, %p83
      %p85 = scmp.ne.s32.totalorder %s76, %s77
      %p86 = scmp.eq.s32.totalorder %s24, 0
      %p87 = por %p85, %p86
      %p88 = scmp.ne.s32.totalorder %s76, %s77
      %p89 = scmp.eq.s32.totalorder %s25, 1
      %p90 = por %p88, %p89
      %p92 = scmp.ne.s32.totalorder %s77, %s91
      %p93 = scmp.eq.s32.totalorder %s25, 0
      %p94 = por %p92, %p93
      %s96 = sadd.s32 %s95, 1
      %p99 = scmp.eq.s32.totalorder %s19, 1
      %p100 = scmp.ne.s32.totalorder %s95, %s97
      %p101 = scmp.eq.s32.totalorder %s19, 0
      %p102 = por %p100, %p101
      %p103 = scmp.ne.s32.totalorder %s95, %s97
      %p104 = scmp.eq.s32.totalorder %s24, 1
      %p105 = por %p103, %p104
      %p106 = scmp.ne.s32.totalorder %s97, %s98
      %p107 = scmp.eq.s32.totalorder %s24, 0
      %p108 = por %p106, %p107
      %p109 = scmp.ne.s32.totalorder %s97, %s98
      %p110 = scmp.eq.s32.totalorder %s25, 1
      %p111 = por %p109, %p110
      %p113 = scmp.ne.s32.totalorder %s98, %s112
      %p114 = scmp.eq.s32.totalorder %s25, 0
      %p115 = por %p113, %p114
      %s117 = sadd.s32 %s116, 1
      %p120 = scmp.eq.s32.totalorder %s19, 1
      %p121 = scmp.ne.s32.totalorder %s116, %s118
      %p122 = scmp.eq.s32.totalorder %s19, 0
      %p123 = por %p121, %p122
      %p124 = scmp.ne.s32.totalorder %s116, %s118
      %p125 = scmp.eq.s32.totalorder %s24, 1
      %p126 = por %p124, %p125
      %p127 = scmp.ne.s32.totalorder %s118, %s119
      %p128 = scmp.eq.s32.totalorder %s24, 0
      %p129 = por %p127, %p128
      %p130 = scmp.ne.s32.totalorder %s118, %s119
      %p131 = scmp.eq.s32.totalorder %s25, 1
      %p132 = por %p130, %p131
      %p134 = scmp.ne.s32.totalorder %s119, %s133
      %p135 = scmp.eq.s32.totalorder %s25, 0
      %p136 = por %p134, %p135
      %s138 = sadd.s32 %s137, 1
      %p141 = scmp.eq.s32.totalorder %s19, 1
      %p142 = scmp.ne.s32.totalorder %s137, %s139
      %p143 = scmp.eq.s32.totalorder %s19, 0
      %p144 = por %p142, %p143
      %p145 = scmp.ne.s32.totalorder %s137, %s139
      %p146 = scmp.eq.s32.totalorder %s24, 1
      %p147 = por %p145, %p146
      %p148 = scmp.ne.s32.totalorder %s139, %s140
      %p149 = scmp.eq.s32.totalorder %s24, 0
      %p150 = por %p148, %p149
      %p151 = scmp.ne.s32.totalorder %s139, %s140
      %p152 = scmp.eq.s32.totalorder %s25, 1
      %p153 = por %p151, %p152
      %p155 = scmp.ne.s32.totalorder %s140, %s154
      %p156 = scmp.eq.s32.totalorder %s25, 0
      %p157 = por %p155, %p156
      %s159 = sadd.s32 %s158, 1
      %p162 = scmp.eq.s32.totalorder %s19, 1
      %p163 = scmp.ne.s32.totalorder %s158, %s160
      %p164 = scmp.eq.s32.totalorder %s19, 0
      %p165 = por %p163, %p164
      %p166 = scmp.ne.s32.totalorder %s158, %s160
      %p167 = scmp.eq.s32.totalorder %s24, 1
      %p168 = por %p166, %p167
      %p169 = scmp.ne.s32.totalorder %s160, %s161
      %p170 = scmp.eq.s32.totalorder %s24, 0
      %p171 = por %p169, %p170
      %p172 = scmp.ne.s32.totalorder %s160, %s161
      %p173 = scmp.eq.s32.totalorder %s25, 1
      %p174 = por %p172, %p173
      %p176 = scmp.ne.s32.totalorder %s161, %s175
      %p177 = scmp.eq.s32.totalorder %s25, 0
      %p178 = por %p176, %p177
      %s180 = sadd.s32 %s179, 1
      %p183 = scmp.eq.s32.totalorder %s19, 1
      %p184 = scmp.ne.s32.totalorder %s179, %s181
      %p185 = scmp.eq.s32.totalorder %s19, 0
      %p186 = por %p184, %p185
      %p187 = scmp.ne.s32.totalorder %s179, %s181
      %p188 = scmp.eq.s32.totalorder %s24, 1
      %p189 = por %p187, %p188
      %p190 = scmp.ne.s32.totalorder %s181, %s182
      %p191 = scmp.eq.s32.totalorder %s24, 0
      %p192 = por %p190, %p191
      %p193 = scmp.ne.s32.totalorder %s181, %s182
      %p194 = scmp.eq.s32.totalorder %s25, 1
      %p195 = por %p193, %p194
      %p197 = scmp.ne.s32.totalorder %s182, %s196
      %p198 = scmp.eq.s32.totalorder %s25, 0
      %p199 = por %p197, %p198
      %s201 = sadd.s32 %s200, 1
      %p204 = scmp.eq.s32.totalorder %s19, 1
      %p205 = scmp.ne.s32.totalorder %s200, %s202
      %p206 = scmp.eq.s32.totalorder %s19, 0
      %p207 = por %p205, %p206
      %p208 = scmp.ne.s32.totalorder %s200, %s202
      %p209 = scmp.eq.s32.totalorder %s24, 1
      %p210 = por %p208, %p209
      %p211 = scmp.ne.s32.totalorder %s202, %s203
      %p212 = scmp.eq.s32.totalorder %s24, 0
      %p213 = por %p211, %p212
      %p214 = scmp.ne.s32.totalorder %s202, %s203
      %p215 = scmp.eq.s32.totalorder %s25, 1
      %p216 = por %p214, %p215
      %p218 = scmp.ne.s32.totalorder %s203, %s217
      %p219 = scmp.eq.s32.totalorder %s25, 0
      %p220 = por %p218, %p219
      %s222 = sadd.s32 %s221, 1
      %p225 = scmp.eq.s32.totalorder %s19, 1
      %p226 = scmp.ne.s32.totalorder %s221, %s223
      %p227 = scmp.eq.s32.totalorder %s19, 0
      %p228 = por %p226, %p227
      %p229 = scmp.ne.s32.totalorder %s221, %s223
      %p230 = scmp.eq.s32.totalorder %s24, 1
      %p231 = por %p229, %p230
      %p232 = scmp.ne.s32.totalorder %s223, %s224
      %p233 = scmp.eq.s32.totalorder %s24, 0
      %p234 = por %p232, %p233
      %p235 = scmp.ne.s32.totalorder %s223, %s224
      %p236 = scmp.eq.s32.totalorder %s25, 1
      %p237 = por %p235, %p236
      %p239 = scmp.ne.s32.totalorder %s224, %s238
      %p240 = scmp.eq.s32.totalorder %s25, 0
      %p241 = por %p239, %p240
      %s242 = ssub.s32 %s19, %s26
      %p243 = scmp.eq.s32.totalorder %s242, 0
      %s245 = sadd.s32 %s244, 1
      %s246 = scalar_select %p243, %s244, %s245
      %p249 = pneg %p243
      %p250 = scmp.eq.s32.totalorder %s19, 1
      %p251 = por %p249, %p250
      %p252 = scmp.ne.s32.totalorder %s244, %s247
      %p253 = scmp.eq.s32.totalorder %s19, 0
      %p254 = por %p252, %p253
      %p255 = scmp.ne.s32.totalorder %s244, %s247
      %p256 = scmp.eq.s32.totalorder %s24, 1
      %p257 = por %p255, %p256
      %p258 = scmp.ne.s32.totalorder %s247, %s248
      %p259 = scmp.eq.s32.totalorder %s24, 0
      %p260 = por %p258, %p259
      %p261 = scmp.ne.s32.totalorder %s247, %s248
      %p262 = scmp.eq.s32.totalorder %s25, 1
      %p263 = por %p261, %p262
      %p265 = scmp.ne.s32.totalorder %s248, %s264
      %p266 = scmp.eq.s32.totalorder %s25, 0
      %p267 = por %p265, %p266
      %p268 = scmp.le.s32.totalorder 1, %s19
      %p269 = scmp.lt.s32.totalorder %s19, 3
      %p270 = pnand %p268, %p269
      %p271 = pneg %p270
      // Predicated region
      $region9: #{tpu_custom_call.1} parent=5 // pred_check
        _
      $region10: #{tpu_custom_call.1} parent=5 // pred_check_branch
        %273 = sbr.rel (%p270) target = $region12
      $region11: #{tpu_custom_call.1} parent=5 // pred_region
        %s274 = ssub.s32 %s19, 1
        // Predicated region
        $region13: #{tpu_custom_call.1} parent=11 // pred_check
          %p275 = pneg %p66
        $region14: #{tpu_custom_call.1} parent=11 // pred_check_branch
          %277 = sbr.rel (%p275) target = $region16
        $region15: #{tpu_custom_call.1} parent=11 // pred_region
          _
        $region16: #{tpu_custom_call.1} parent=11 // pred_fallthru
          _
        // Predicated region
        $region17: #{tpu_custom_call.1} parent=11 // pred_check
          %p278 = pneg %p87
        $region18: #{tpu_custom_call.1} parent=11 // pred_check_branch
          %280 = sbr.rel (%p278) target = $region20
        $region19: #{tpu_custom_call.1} parent=11 // pred_region
          _
        $region20: #{tpu_custom_call.1} parent=11 // pred_fallthru
          _
        // Predicated region
        $region21: #{tpu_custom_call.1} parent=11 // pred_check
          %p281 = pneg %p108
        $region22: #{tpu_custom_call.1} parent=11 // pred_check_branch
          %283 = sbr.rel (%p281) target = $region24
        $region23: #{tpu_custom_call.1} parent=11 // pred_region
          _
        $region24: #{tpu_custom_call.1} parent=11 // pred_fallthru
          _
        // Predicated region
        $region25: #{tpu_custom_call.1} parent=11 // pred_check
          %p284 = pneg %p129
        $region26: #{tpu_custom_call.1} parent=11 // pred_check_branch
          %286 = sbr.rel (%p284) target = $region28
        $region27: #{tpu_custom_call.1} parent=11 // pred_region
          _
        $region28: #{tpu_custom_call.1} parent=11 // pred_fallthru
          _
        // Predicated region
        $region29: #{tpu_custom_call.1} parent=11 // pred_check
          %p287 = pneg %p150
        $region30: #{tpu_custom_call.1} parent=11 // pred_check_branch
          %289 = sbr.rel (%p287) target = $region32
        $region31: #{tpu_custom_call.1} parent=11 // pred_region
          _
        $region32: #{tpu_custom_call.1} parent=11 // pred_fallthru
          _
        // Predicated region
        $region33: #{tpu_custom_call.1} parent=11 // pred_check
          %p290 = pneg %p171
        $region34: #{tpu_custom_call.1} parent=11 // pred_check_branch
          %292 = sbr.rel (%p290) target = $region36
        $region35: #{tpu_custom_call.1} parent=11 // pred_region
          _
        $region36: #{tpu_custom_call.1} parent=11 // pred_fallthru
          _
        // Predicated region
        $region37: #{tpu_custom_call.1} parent=11 // pred_check
          %p293 = pneg %p192
        $region38: #{tpu_custom_call.1} parent=11 // pred_check_branch
          %295 = sbr.rel (%p293) target = $region40
        $region39: #{tpu_custom_call.1} parent=11 // pred_region
          _
        $region40: #{tpu_custom_call.1} parent=11 // pred_fallthru
          _
        // Predicated region
        $region41: #{tpu_custom_call.1} parent=11 // pred_check
          %p296 = pneg %p213
        $region42: #{tpu_custom_call.1} parent=11 // pred_check_branch
          %298 = sbr.rel (%p296) target = $region44
        $region43: #{tpu_custom_call.1} parent=11 // pred_region
          _
        $region44: #{tpu_custom_call.1} parent=11 // pred_fallthru
          _
        // Predicated region
        $region45: #{tpu_custom_call.1} parent=11 // pred_check
          %p299 = pneg %p234
        $region46: #{tpu_custom_call.1} parent=11 // pred_check_branch
          %301 = sbr.rel (%p299) target = $region48
        $region47: #{tpu_custom_call.1} parent=11 // pred_region
          _
        $region48: #{tpu_custom_call.1} parent=11 // pred_fallthru
          _
      $region12: #{tpu_custom_call.1} parent=5 // pred_fallthru
        _
      %p302 = scmp.lt.s32.totalorder %s19, 2
      // Predicated region
      $region49: #{tpu_custom_call.1} parent=5 // pred_check
        %p303 = pneg %p302
      $region50: #{tpu_custom_call.1} parent=5 // pred_check_branch
        %305 = sbr.rel (%p303) target = $region52
      $region51: #{tpu_custom_call.1} parent=5 // pred_region
        // Predicated region
        $region53: #{tpu_custom_call.1} parent=51 // pred_check
          %p306 = pneg %p39
        $region54: #{tpu_custom_call.1} parent=51 // pred_check_branch
          %308 = sbr.rel (%p306) target = $region56
        $region55: #{tpu_custom_call.1} parent=51 // pred_region
          %p309 = scmp.lt.s32.totalorder %s19, 1
          %s310 = scalar_select %p309, %s19, 1
          %s311 = smul.addr %s310, 2
          %s312 = smul.addr %s311, 4
          %s313 = scalar_lea.vmem %s0, %s312
        $region56: #{tpu_custom_call.1} parent=51 // pred_fallthru
          _
      $region52: #{tpu_custom_call.1} parent=5 // pred_fallthru
        _
      %p314 = scmp.le.s32.totalorder 1, %s19
      %p315 = scmp.lt.s32.totalorder %s19, 3
      %p316 = pnand %p314, %p315
      %p317 = pneg %p316
      // Predicated region
      $region57: #{tpu_custom_call.1} parent=5 // pred_check
        _
      $region58: #{tpu_custom_call.1} parent=5 // pred_check_branch
        %319 = sbr.rel (%p316) target = $region60
      $region59: #{tpu_custom_call.1} parent=5 // pred_region
        %s320 = ssub.s32 %s19, 1
        %p321 = scmp.lt.s32.totalorder %s24, 1
        %s322 = scalar_select %p321, %s24, 1
        %s323 = smul.addr %s322, 2
        %s324 = smul.addr %s323, 4
        %s325 = scalar_lea.vmem %s0, %s324
        %p326 = pneg %p45
        %p327 = pneg %p42
        %p328 = pneg %p66
        %p329 = pneg %p63
        %p330 = pneg %p87
        %p331 = pneg %p84
        %p332 = pneg %p108
        %p333 = pneg %p105
        %p334 = pneg %p129
        %p335 = pneg %p126
        %p336 = pneg %p150
        %p337 = pneg %p147
        %p338 = pneg %p171
        %p339 = pneg %p168
        %p340 = pneg %p192
        %p341 = pneg %p189
        %p342 = pneg %p213
        %p343 = pneg %p210
        %p344 = pneg %p234
        %p345 = pneg %p231
        %p346 = pneg %p260
        %p347 = pneg %p257
        %s348 = sand.u32 %s247, 1
        %s349 = scalar_lea.sflag [#allocation3], %s348
        %s350 = sand.u32 %s247, 1
        %s351 = smul.addr %s350, 32
        %s352 = scalar_lea.vmem [#allocation2], %s351
        %p353 = scmp.lt.s32.totalorder %s24, 1
        %s354 = scalar_select %p353, %s24, 1
        %s355 = smul.addr %s354, 2
        %s356 = smul.addr %s355, 4
        %s357 = scalar_lea.vmem %s0, %s356
        %v358 = vld [vmem:[%s357] sm:$0xff]
        %v359 = vld [vmem:[%s2] sm:$0xff]
        %v360 = vld [vmem:[%s3] sm:$0xff]
        %362 = vset.pattern.permute.xlu0 0
        %363 = vperm.xlu0 %362, %v360
        %v364 = vpop.permute.xlu0 %363
        %367 = vst [vmem:[#allocation1] ss:$2 sm:$0xff] %v358
        %v368 = vld.sshfl [vmem:[#allocation1] sm:$0xff pattern:$0x75316420]
        %v369 = vld.sshfl [vmem:[#allocation1 + $0x8] sm:$0xff pattern:$0x75316420]
        %vm370 = vcmask 31744
        %v372 = vsel %vm370, %v359, 0
        %vm374 = vcmask 1043456
        %v375 = vsel %vm374, %v368, 0
        %v377 = vsel %vm374, %v369, 0
        %379 = vmatpush.msra.mxu0 0.0
        %380 = vmatpush.msra.mxu0 0.0
        %381 = vmatpush.msra.mxu0 0.0
        %382 = vmatpush.msra.mxu0 0.0
        %383 = vmatpush.msra.mxu0 0.0
        %384 = vmatpush.msra.mxu0 0.0
        %385 = vmatpush.msra.mxu0 0.0
        %386 = vmatpush.msra.mxu0 0.0
        %387 = vmatpush.msra.mxu0 0.0
        %388 = vmatpush.msra.mxu0 0.0
        %389 = vmatpush.msra.mxu0 0.0
        %390 = vmatpush.msra.mxu0 0.0
        %391 = vmatpush.msra.mxu0 0.0
        %392 = vmatpush.msra.mxu0 0.0
        %393 = vmatpush.msra.mxu0 0.0
        %394 = vmatpush.msra.mxu0 %v375
        %395 = vmatmul.f32.gmra.mxu0 %v372
        %v396 = vpop.f32.mrf.mxu0
        %v397 = vadd.f32 %v364, %v396
        %398 = vdwg.mxu0
        %399 = vmatpush.msra.mxu0 0.0
        %400 = vmatpush.msra.mxu0 0.0
        %401 = vmatpush.msra.mxu0 0.0
        %402 = vmatpush.msra.mxu0 0.0
        %403 = vmatpush.msra.mxu0 0.0
        %404 = vmatpush.msra.mxu0 0.0
        %405 = vmatpush.msra.mxu0 0.0
        %406 = vmatpush.msra.mxu0 0.0
        %407 = vmatpush.msra.mxu0 0.0
        %408 = vmatpush.msra.mxu0 0.0
        %409 = vmatpush.msra.mxu0 0.0
        %410 = vmatpush.msra.mxu0 0.0
        %411 = vmatpush.msra.mxu0 0.0
        %412 = vmatpush.msra.mxu0 0.0
        %413 = vmatpush.msra.mxu0 0.0
        %414 = vmatpush.msra.mxu0 %v377
        %415 = vmatmul.f32.gmra.mxu0 %v372
        %v416 = vpop.f32.mrf.mxu0
        %v417 = vadd.f32 %v364, %v416
        %418 = vdwg.mxu0
        %v419 = vmax.f32 %v397, 0.0
        %v420 = vmax.f32 %v417, 0.0
        %421 = vrot.lane.b32.xlu0 %v419, 17
        %v422 = vpop.permute.xlu0 %421
        %423 = vrot.lane.b32.xlu0 %v420, 17
        %v424 = vpop.permute.xlu0 %423
        %v425 = vlaneseq
        %v426 = vand.u32 %v425, 127
        %vm427 = vcmp.lt.s32.totalorder %v426, 17
        %v428 = vsel %vm427, %v422, %v424
        %v429 = vsel %vm427, %v424, %v422
        %v430 = vld [vmem:[%s1] ss:$8 sm:$0x3]
        %v432 = vperm.slane %v430, 0
        %v433 = vperm.slane %v430, 1
        %v436 = vmul.f32 %v429, %v432
        %v437 = vmul.f32 %v428, %v433
        %438 = vrot.lane.b32.xlu0 %v419, 16
        %v439 = vpop.permute.xlu0 %438
        %440 = vrot.lane.b32.xlu0 %v420, 16
        %v441 = vpop.permute.xlu0 %440
        %vm442 = vcmp.lt.s32.totalorder %v426, 16
        %v443 = vsel %vm442, %v439, %v441
        %v444 = vsel %vm442, %v441, %v439
        %s445 = scalar_lea.vmem %s1, 1
        %v446 = vld [vmem:[%s445] ss:$8 sm:$0x3]
        %v448 = vperm.slane %v446, 0
        %v449 = vperm.slane %v446, 1
        %v452 = vmul.f32 %v444, %v448
        %v453 = vmul.f32 %v443, %v449
        %454 = vrot.lane.b32.xlu0 %v419, 15
        %v455 = vpop.permute.xlu0 %454
        %456 = vrot.lane.b32.xlu0 %v420, 15
        %v457 = vpop.permute.xlu0 %456
        %vm458 = vcmp.lt.s32.totalorder %v426, 15
        %v459 = vsel %vm458, %v455, %v457
        %v460 = vsel %vm458, %v457, %v455
        %s461 = scalar_lea.vmem %s1, 2
        %v462 = vld [vmem:[%s461] ss:$8 sm:$0x3]
        %v464 = vperm.slane %v462, 0
        %v465 = vperm.slane %v462, 1
        %v468 = vmul.f32 %v460, %v464
        %v469 = vmul.f32 %v459, %v465
        %470 = vrot.lane.b32.xlu0 %v419, 1
        %v471 = vpop.permute.xlu0 %470
        %472 = vrot.lane.b32.xlu0 %v420, 1
        %v473 = vpop.permute.xlu0 %472
        %vm474 = vcmp.lt.s32.totalorder %v426, 1
        %v475 = vsel %vm474, %v471, %v473
        %v476 = vsel %vm474, %v473, %v471
        %s477 = scalar_lea.vmem %s1, 3
        %v478 = vld [vmem:[%s477] ss:$8 sm:$0x3]
        %v480 = vperm.slane %v478, 0
        %v481 = vperm.slane %v478, 1
        %v484 = vmul.f32 %v476, %v480
        %v485 = vmul.f32 %v475, %v481
        %486 = vrot.lane.b32.xlu0 %v419, 127
        %v487 = vpop.permute.xlu0 %486
        %488 = vrot.lane.b32.xlu0 %v420, 127
        %v489 = vpop.permute.xlu0 %488
        %vm490 = vcmp.lt.s32.totalorder %v426, 127
        %v491 = vsel %vm490, %v487, %v489
        %v492 = vsel %vm490, %v489, %v487
        %s493 = scalar_lea.vmem %s1, 4
        %v494 = vld [vmem:[%s493] ss:$8 sm:$0x3]
        %v496 = vperm.slane %v494, 0
        %v497 = vperm.slane %v494, 1
        %v500 = vmul.f32 %v491, %v496
        %v501 = vmul.f32 %v492, %v497
        %502 = vrot.lane.b32.xlu0 %v419, 113
        %v503 = vpop.permute.xlu0 %502
        %504 = vrot.lane.b32.xlu0 %v420, 113
        %v505 = vpop.permute.xlu0 %504
        %vm506 = vcmp.lt.s32.totalorder %v426, 113
        %v507 = vsel %vm506, %v503, %v505
        %v508 = vsel %vm506, %v505, %v503
        %s509 = scalar_lea.vmem %s1, 5
        %v510 = vld [vmem:[%s509] ss:$8 sm:$0x3]
        %v512 = vperm.slane %v510, 0
        %v513 = vperm.slane %v510, 1
        %v516 = vmul.f32 %v507, %v512
        %v517 = vmul.f32 %v508, %v513
        %518 = vrot.lane.b32.xlu0 %v419, 112
        %v519 = vpop.permute.xlu0 %518
        %520 = vrot.lane.b32.xlu0 %v420, 112
        %v521 = vpop.permute.xlu0 %520
        %vm522 = vcmp.lt.s32.totalorder %v426, 112
        %v523 = vsel %vm522, %v519, %v521
        %v524 = vsel %vm522, %v521, %v519
        %s525 = scalar_lea.vmem %s1, 6
        %v526 = vld [vmem:[%s525] ss:$8 sm:$0x3]
        %v528 = vperm.slane %v526, 0
        %v529 = vperm.slane %v526, 1
        %v532 = vmul.f32 %v523, %v528
        %v533 = vmul.f32 %v524, %v529
        %534 = vrot.lane.b32.xlu0 %v419, 111
        %v535 = vpop.permute.xlu0 %534
        %536 = vrot.lane.b32.xlu0 %v420, 111
        %v537 = vpop.permute.xlu0 %536
        %vm538 = vcmp.lt.s32.totalorder %v426, 111
        %v539 = vsel %vm538, %v535, %v537
        %v540 = vsel %vm538, %v537, %v535
        %s541 = scalar_lea.vmem %s1, 7
        %v542 = vld [vmem:[%s541] ss:$8 sm:$0x3]
        %v544 = vperm.slane %v542, 0
        %v545 = vperm.slane %v542, 1
        %v548 = vmul.f32 %v539, %v544
        %v549 = vmul.f32 %v540, %v545
        %v550 = vld [vmem:[%s4] sm:$0xff]
        %v551 = vld [vmem:[%s5] sm:$0xff]
        %553 = vset.pattern.permute.xlu0 0
        %554 = vperm.xlu0 %553, %v551
        %v555 = vpop.permute.xlu0 %554
        %vm557 = vcmask 588800
        %v559 = vsel %vm557, %v550, 0
        %561 = vmatpush.msra.mxu0 0.0
        %562 = vmatpush.msra.mxu0 0.0
        %563 = vmatpush.msra.mxu0 0.0
        %564 = vmatpush.msra.mxu0 0.0
        %565 = vmatpush.msra.mxu0 0.0
        %566 = vmatpush.msra.mxu0 0.0
        %567 = vmatpush.msra.mxu0 0.0
        %568 = vmatpush.msra.mxu0 %v548
        %569 = vmatpush.msra.mxu0 %v532
        %570 = vmatpush.msra.mxu0 %v516
        %571 = vmatpush.msra.mxu0 %v500
        %572 = vmatpush.msra.mxu0 %v419
        %573 = vmatpush.msra.mxu0 %v484
        %574 = vmatpush.msra.mxu0 %v468
        %575 = vmatpush.msra.mxu0 %v452
        %576 = vmatpush.msra.mxu0 %v436
        %577 = vmatmul.f32.gmra.mxu0 %v559
        %v578 = vpop.f32.mrf.mxu0
        %v579 = vadd.f32 %v555, %v578
        %580 = vdwg.mxu0
        %581 = vmatpush.msra.mxu0 0.0
        %582 = vmatpush.msra.mxu0 0.0
        %583 = vmatpush.msra.mxu0 0.0
        %584 = vmatpush.msra.mxu0 0.0
        %585 = vmatpush.msra.mxu0 0.0
        %586 = vmatpush.msra.mxu0 0.0
        %587 = vmatpush.msra.mxu0 0.0
        %588 = vmatpush.msra.mxu0 %v549
        %589 = vmatpush.msra.mxu0 %v533
        %590 = vmatpush.msra.mxu0 %v517
        %591 = vmatpush.msra.mxu0 %v501
        %592 = vmatpush.msra.mxu0 %v420
        %593 = vmatpush.msra.mxu0 %v485
        %594 = vmatpush.msra.mxu0 %v469
        %595 = vmatpush.msra.mxu0 %v453
        %596 = vmatpush.msra.mxu0 %v437
        %597 = vmatmul.f32.gmra.mxu0 %v559
        %v598 = vpop.f32.mrf.mxu0
        %v599 = vadd.f32 %v555, %v598
        %600 = vdwg.mxu0
        %v601 = vmax.f32 %v579, 0.0
        %v602 = vmax.f32 %v599, 0.0
        %v603 = vld [vmem:[%s6] sm:$0xff]
        %v604 = vld [vmem:[%s6 + $0x8] sm:$0xff]
        %v605 = vld [vmem:[%s7] sm:$0xff]
        %v606 = vld [vmem:[%s7 + $0x8] sm:$0xff]
        %608 = vset.pattern.permute.xlu0 0
        %609 = vperm.xlu0 %608, %v605
        %v610 = vpop.permute.xlu0 %609
        %613 = vset.pattern.permute.xlu0 0
        %614 = vperm.xlu0 %613, %v606
        %v615 = vpop.permute.xlu0 %614
        %vm617 = vcmask 64512
        %v619 = vsel %vm617, %v603, 0
        %v622 = vsel %vm617, %v604, 0
        %624 = vmatpush.msra.mxu0 0.0
        %625 = vmatpush.msra.mxu0 0.0
        %626 = vmatpush.msra.mxu0 0.0
        %627 = vmatpush.msra.mxu0 0.0
        %628 = vmatpush.msra.mxu0 0.0
        %629 = vmatpush.msra.mxu0 0.0
        %630 = vmatpush.msra.mxu0 0.0
        %631 = vmatpush.msra.mxu0 0.0
        %632 = vmatpush.msra.mxu0 0.0
        %633 = vmatpush.msra.mxu0 0.0
        %634 = vmatpush.msra.mxu0 0.0
        %635 = vmatpush.msra.mxu0 0.0
        %636 = vmatpush.msra.mxu0 0.0
        %637 = vmatpush.msra.mxu0 0.0
        %638 = vmatpush.msra.mxu0 0.0
        %639 = vmatpush.msra.mxu0 %v601
        %640 = vmatmul.f32.gmra.mxu0 %v619
        %v641 = vpop.f32.mrf.mxu0
        %v642 = vadd.f32 %v610, %v641
        %643 = vmatmul.f32.gmra.mxu0 %v622
        %v644 = vpop.f32.mrf.mxu0
        %v645 = vadd.f32 %v615, %v644
        %646 = vdwg.mxu0
        %647 = vmatpush.msra.mxu0 0.0
        %648 = vmatpush.msra.mxu0 0.0
        %649 = vmatpush.msra.mxu0 0.0
        %650 = vmatpush.msra.mxu0 0.0
        %651 = vmatpush.msra.mxu0 0.0
        %652 = vmatpush.msra.mxu0 0.0
        %653 = vmatpush.msra.mxu0 0.0
        %654 = vmatpush.msra.mxu0 0.0
        %655 = vmatpush.msra.mxu0 0.0
        %656 = vmatpush.msra.mxu0 0.0
        %657 = vmatpush.msra.mxu0 0.0
        %658 = vmatpush.msra.mxu0 0.0
        %659 = vmatpush.msra.mxu0 0.0
        %660 = vmatpush.msra.mxu0 0.0
        %661 = vmatpush.msra.mxu0 0.0
        %662 = vmatpush.msra.mxu0 %v602
        %663 = vmatmul.f32.gmra.mxu0 %v619
        %v664 = vpop.f32.mrf.mxu0
        %v665 = vadd.f32 %v610, %v664
        %666 = vmatmul.f32.gmra.mxu0 %v622
        %v667 = vpop.f32.mrf.mxu0
        %v668 = vadd.f32 %v615, %v667
        %669 = vdwg.mxu0
        %v670 = vld [vmem:[%s8] sm:$0xff]
        %v671 = vld [vmem:[%s8 + $0x8] sm:$0xff]
        %v672 = vld [vmem:[%s9] sm:$0xff]
        %v673 = vld [vmem:[%s9 + $0x8] sm:$0xff]
        %675 = vset.pattern.permute.xlu0 0
        %676 = vperm.xlu0 %675, %v672
        %v677 = vpop.permute.xlu0 %676
        %680 = vset.pattern.permute.xlu0 0
        %681 = vperm.xlu0 %680, %v673
        %v682 = vpop.permute.xlu0 %681
        %684 = vst [vmem:[#allocation1] ss:$2 sm:$0xff] %v358
        %v685 = vld.sshfl [vmem:[#allocation1] sm:$0xff pattern:$0x75316420]
        %v686 = vld.sshfl [vmem:[#allocation1 + $0x8] sm:$0xff pattern:$0x75316420]
        %v688 = vsel %vm370, %v670, 0
        %v691 = vsel %vm370, %v671, 0
        %v693 = vsel %vm374, %v685, 0
        %v695 = vsel %vm374, %v686, 0
        %697 = vmatpush.msra.mxu0 0.0
        %698 = vmatpush.msra.mxu0 0.0
        %699 = vmatpush.msra.mxu0 0.0
        %700 = vmatpush.msra.mxu0 0.0
        %701 = vmatpush.msra.mxu0 0.0
        %702 = vmatpush.msra.mxu0 0.0
        %703 = vmatpush.msra.mxu0 0.0
        %704 = vmatpush.msra.mxu0 0.0
        %705 = vmatpush.msra.mxu0 0.0
        %706 = vmatpush.msra.mxu0 0.0
        %707 = vmatpush.msra.mxu0 0.0
        %708 = vmatpush.msra.mxu0 0.0
        %709 = vmatpush.msra.mxu0 0.0
        %710 = vmatpush.msra.mxu0 0.0
        %711 = vmatpush.msra.mxu0 0.0
        %712 = vmatpush.msra.mxu0 %v693
        %713 = vmatmul.f32.gmra.mxu0 %v688
        %v714 = vpop.f32.mrf.mxu0
        %v715 = vadd.f32 %v677, %v714
        %716 = vmatmul.f32.gmra.mxu0 %v691
        %v717 = vpop.f32.mrf.mxu0
        %v718 = vadd.f32 %v682, %v717
        %719 = vdwg.mxu0
        %720 = vmatpush.msra.mxu0 0.0
        %721 = vmatpush.msra.mxu0 0.0
        %722 = vmatpush.msra.mxu0 0.0
        %723 = vmatpush.msra.mxu0 0.0
        %724 = vmatpush.msra.mxu0 0.0
        %725 = vmatpush.msra.mxu0 0.0
        %726 = vmatpush.msra.mxu0 0.0
        %727 = vmatpush.msra.mxu0 0.0
        %728 = vmatpush.msra.mxu0 0.0
        %729 = vmatpush.msra.mxu0 0.0
        %730 = vmatpush.msra.mxu0 0.0
        %731 = vmatpush.msra.mxu0 0.0
        %732 = vmatpush.msra.mxu0 0.0
        %733 = vmatpush.msra.mxu0 0.0
        %734 = vmatpush.msra.mxu0 0.0
        %735 = vmatpush.msra.mxu0 %v695
        %736 = vmatmul.f32.gmra.mxu0 %v688
        %v737 = vpop.f32.mrf.mxu0
        %v738 = vadd.f32 %v677, %v737
        %739 = vmatmul.f32.gmra.mxu0 %v691
        %v740 = vpop.f32.mrf.mxu0
        %v741 = vadd.f32 %v682, %v740
        %742 = vdwg.mxu0
        %v743 = vadd.f32 %v642, %v715
        %v744 = vadd.f32 %v665, %v738
        %v745 = vadd.f32 %v645, %v718
        %v746 = vadd.f32 %v668, %v741
        %v747 = vmax.f32 %v743, 0.0
        %v748 = vmax.f32 %v744, 0.0
        %v749 = vmax.f32 %v745, 0.0
        %v750 = vmax.f32 %v746, 0.0
        %751 = vst [vmem:[%s352] sm:$0xff] %v747
        %752 = vst [vmem:[%s352 + $0x8] sm:$0xff] %v748
        %753 = vst [vmem:[%s352 + $0x10] sm:$0xff] %v749
        %754 = vst [vmem:[%s352 + $0x18] sm:$0xff] %v750
        %s755 = sand.u32 %s247, 1
        %s756 = scalar_lea.sflag [#allocation3], %s755
        %s757 = sand.u32 %s247, 1
        %s758 = smul.addr %s757, 32
        %s759 = scalar_lea.vmem [#allocation2], %s758
        // Predicated region
        $region61: #{tpu_custom_call.1} parent=59 // pred_check
          %p760 = pneg %p257
        $region62: #{tpu_custom_call.1} parent=59 // pred_check_branch
          %762 = sbr.rel (%p760) target = $region64
        $region63: #{tpu_custom_call.1} parent=59 // pred_region
          %764 = vsyncadd %s756, 0
          %s765 = smul.addr %s24, 4
          %s766 = smul.addr %s765, 8
          %s767 = scalar_lea.hbm %s10, %s766
          %s768 = sshll.u32 %s759, 4
          %s769 = int_to_ptr.vmem [resolvable:$true] %s768
          %s770 = sshll.u32 %s767, 4
          %s771 = int_to_ptr.hbm [resolvable:$true] %s770
          %776 = dma.vmem_to_hbm [thread:$0]  %s769, 512, %s771, %s756, 256, 256, 16
        $region64: #{tpu_custom_call.1} parent=59 // pred_fallthru
          _
      $region60: #{tpu_custom_call.1} parent=5 // pred_fallthru
        _
      %p777 = scmp.le.s32.totalorder 2, %s19
      // Predicated region
      $region65: #{tpu_custom_call.1} parent=5 // pred_check
        %p778 = pneg %p777
      $region66: #{tpu_custom_call.1} parent=5 // pred_check_branch
        %780 = sbr.rel (%p778) target = $region68
      $region67: #{tpu_custom_call.1} parent=5 // pred_region
        %s781 = ssub.s32 %s19, 2
        // Predicated region
        $region69: #{tpu_custom_call.1} parent=67 // pred_check
          %p782 = pneg %p263
        $region70: #{tpu_custom_call.1} parent=67 // pred_check_branch
          %784 = sbr.rel (%p782) target = $region72
        $region71: #{tpu_custom_call.1} parent=67 // pred_region
          %s785 = sand.u32 %s248, 1
          %s786 = scalar_lea.sflag [#allocation3], %s785
          %s787 = sand.u32 %s248, 1
          %s788 = smul.addr %s787, 32
          %s789 = scalar_lea.vmem [#allocation2], %s788
          %791 = dma.done %s786, 512
        $region72: #{tpu_custom_call.1} parent=67 // pred_fallthru
          _
      $region68: #{tpu_custom_call.1} parent=5 // pred_fallthru
        _
    $region6: #{tpu_custom_call.1} parent=1 // loop_footer
      %s23 = sadd.s32 1, %s19
    $region7: #{tpu_custom_call.1} parent=1 // loop_footer_branch
      %18 = sbr.rel target = $region3
    $region8: #{tpu_custom_call.1} parent=1 // loop_exit
      _
    %792 = vsyncpa [#allocation3], 1
    %s793 = scalar_lea.sflag [#allocation3], 1
    %794 = vsyncpa %s793, 1

</llo_original>
